<compile_context>
chip_gen: v7x
topology: tpu7x:2x2x1
jax: 0.10.0
libtpu: 0.0.40
codegen_flags: <defaults>
</compile_context>

<pallas_src>
import functools
import math

import jax
import jax.numpy as jnp
from jax import lax
from jax.experimental import pallas as pl
from jax.experimental.pallas import tpu as pltpu

_TILE_FOOTPRINT_BYTES = 16 << 20   # target total double-buffered tile footprint
_VMEM_LIMIT_BYTES = 32 << 20       # explicit scoped-VMEM limit (>= all defaults, < v7x physical)
_MAX_LANES = 8192                  # cap on the lane (last) dim of the 2-D view
_MIN_GRID_BLOCKS = 4               # keep >= 4 grid steps when possible (v7x has 2 TCs)


def _round_up(x, m):
    return -(-x // m) * m


def _sublane_multiple(dtype):
    # Packed sublane tiling: f32 -> 8, bf16/f16 -> 16, int8/fp8 -> 32.
    return max(8, 32 // jnp.dtype(dtype).itemsize)


def _choose_view(n_elem, sublane):
    """Pick (rows, lanes) with rows * lanes == n_elem (metadata-only reshape).

    Prefers a lane dim that is a multiple of 128 (full 128-lane vregs,
    contiguous DMAs, unmasked stores), as large as possible up to _MAX_LANES,
    while leaving enough rows for >= _MIN_GRID_BLOCKS sublane-aligned blocks.
    """
    def best_128_multiple(cap):
        if n_elem % 128 != 0 or cap < 128:
            return None
        q = n_elem // 128
        for d in range(min(q, cap // 128), 0, -1):
            if q % d == 0:
                return 128 * d
        return None

    lanes = best_128_multiple(min(_MAX_LANES,
                                  n_elem // (_MIN_GRID_BLOCKS * sublane)))
    if lanes is None:
        lanes = best_128_multiple(min(_MAX_LANES, n_elem))
    if lanes is None:
        # No 128-multiple factorization (odd element counts): use the largest
        # divisor <= _MAX_LANES; the block then spans the full lane extent.
        # (Pathological prime sizes degrade to lanes == 1 but stay correct.)
        lanes = 1
        for cand in range(min(_MAX_LANES, n_elem), 0, -1):
            if n_elem % cand == 0:
                lanes = cand
                break
    return n_elem // lanes, lanes


def _choose_block_rows(rows, lanes, itemsize, sublane, tile_bytes):
    """Row block: ~tile_bytes of VMEM per stream, sublane-aligned, and small
    enough that the grid keeps >= _MIN_GRID_BLOCKS steps when possible."""
    if rows <= sublane:
        return rows
    padded_lanes = _round_up(lanes, 128)
    row_bytes = padded_lanes * itemsize
    br = max(sublane, (tile_bytes // row_bytes) // sublane * sublane)
    target = max(sublane, _round_up(pl.cdiv(rows, _MIN_GRID_BLOCKS), sublane))
    return min(br, target)


# ----------------------------- kernels -------------------------------------

def _mse_none_kernel(*refs, loss_weight, has_weight):
    """Element-wise loss_weight * (p - t)^2 [* w] for one (br, lanes) tile.

    Out-of-bounds rows of a partial last block are dropped by Pallas on
    writeback, so no masking is needed here.
    """
    if has_weight:
        p_ref, t_ref, w_ref, o_ref = refs
    else:
        p_ref, t_ref, o_ref = refs
        w_ref = None
    d = p_ref[...].astype(jnp.float32) - t_ref[...].astype(jnp.float32)
    sq = d * d
    if w_ref is not None:
        sq = sq * w_ref[...].astype(jnp.float32)
    if loss_weight != 1.0:
        sq = sq * loss_weight
    o_ref[...] = sq.astype(o_ref.dtype)


def _mse_partial_kernel(*refs, has_weight, block_rows, total_rows, needs_mask):
    """Per-tile partial sum over the row axis, written as a (1, lanes) block.

    The ragged-tail mask only runs on the last grid step (pl.when-gated), so
    full tiles stay pure load-sub-mul-add.
    """
    if has_weight:
        p_ref, t_ref, w_ref, o_ref = refs
    else:
        p_ref, t_ref, o_ref = refs
        w_ref = None
    d = p_ref[...].astype(jnp.float32) - t_ref[...].astype(jnp.float32)
    sq = d * d
    if w_ref is not None:
        sq = sq * w_ref[...].astype(jnp.float32)

    if needs_mask:
        i = pl.program_id(0)
        is_last = i == pl.num_programs(0) - 1

        @pl.when(jnp.logical_not(is_last))
        def _():
            o_ref[...] = jnp.sum(sq, axis=0, keepdims=True)

        @pl.when(is_last)
        def _():
            row_ids = (lax.broadcasted_iota(jnp.int32, sq.shape, 0)
                       + i * block_rows)
            masked = jnp.where(row_ids < total_rows, sq, 0.0)
            o_ref[...] = jnp.sum(masked, axis=0, keepdims=True)
    else:
        o_ref[...] = jnp.sum(sq, axis=0, keepdims=True)


# ----------------------------- wrapper --------------------------------------

def mse_loss_pallas(pred, target, weight=None, *, loss_weight=1.0,
                    reduction="mean"):
    if reduction not in ("none", "mean", "sum"):
        raise ValueError(f"Unsupported reduction mode: {reduction}")
    assert pred.shape == target.shape
    has_weight = weight is not None
    if has_weight:
        assert weight.shape == pred.shape

    orig_shape = pred.shape
    n_elem = int(math.prod(orig_shape))
    itemsize = jnp.dtype(pred.dtype).itemsize
    sublane = _sublane_multiple(pred.dtype)

    # Lane-dense (rows, lanes) view — metadata-only reshape of the contiguous
    # element stream (element-wise op, so any factorization is equivalent).
    rows, lanes = _choose_view(n_elem, sublane)
    inputs = [pred.reshape(rows, lanes), target.reshape(rows, lanes)]
    if has_weight:
        inputs.append(weight.reshape(rows, lanes))
    n_in = len(inputs)

    # Tile budget derived from the actual number of double-buffered streams.
    num_streams = n_in + (1 if reduction == "none" else 0)
    tile_bytes = _TILE_FOOTPRINT_BYTES // (2 * num_streams)
    br = _choose_block_rows(rows, lanes, itemsize, sublane, tile_bytes)
    num_blocks = pl.cdiv(rows, br)

    in_spec = pl.BlockSpec((br, lanes), lambda i: (i, 0))
    compiler_params = pltpu.CompilerParams(
        dimension_semantics=("parallel",),
        vmem_limit_bytes=_VMEM_LIMIT_BYTES)

    if reduction == "none":
        out = pl.pallas_call(
            functools.partial(_mse_none_kernel,
                              loss_weight=float(loss_weight),
                              has_weight=has_weight),
            out_shape=jax.ShapeDtypeStruct((rows, lanes), pred.dtype),
            grid_spec=pltpu.PrefetchScalarGridSpec(
                num_scalar_prefetch=0,
                grid=(num_blocks,),
                in_specs=[in_spec] * n_in,
                out_specs=pl.BlockSpec((br, lanes), lambda i: (i, 0)),
            ),
            compiler_params=compiler_params,
        )(*inputs)
        return out.reshape(orig_shape)

    # 'mean' / 'sum': lane-dense per-tile partial row-sums, independent grid
    # steps ("parallel" -> both v7x cores stream HBM); tiny final sum outside.
    needs_mask = (num_blocks * br) != rows
    partials = pl.pallas_call(
        functools.partial(_mse_partial_kernel,
                          has_weight=has_weight,
                          block_rows=br,
                          total_rows=rows,
                          needs_mask=needs_mask),
        out_shape=jax.ShapeDtypeStruct((num_blocks, lanes), jnp.float32),
        grid_spec=pltpu.PrefetchScalarGridSpec(
            num_scalar_prefetch=0,
            grid=(num_blocks,),
            in_specs=[in_spec] * n_in,
            out_specs=pl.BlockSpec((1, lanes), lambda i: (i, 0)),
        ),
        compiler_params=compiler_params,
    )(*inputs)

    scale = float(loss_weight) / n_elem if reduction == "mean" else float(loss_weight)
    return (jnp.sum(partials, dtype=jnp.float32) * scale).astype(pred.dtype)


class MSELossPallas:
    """Mirror of the PyTorch MSELoss module (forward only)."""

    def __init__(self, loss_weight=1.0, reduction="mean"):
        if reduction not in ("none", "mean", "sum"):
            raise ValueError(f"Unsupported reduction mode: {reduction}")
        self.loss_weight = loss_weight
        self.reduction = reduction

    def __call__(self, pred, target, weight=None, **kwargs):
        return mse_loss_pallas(pred, target, weight,
                               loss_weight=self.loss_weight,
                               reduction=self.reduction)


# ----------------------------- demo / check ---------------------------------

if __name__ == "__main__":
    key = jax.random.PRNGKey(0)
    k1, k2, k3 = jax.random.split(key, 3)

    # Module-default NCHW shape.
    N, C, H, W = 2, 4, 16, 16
    pred = jax.random.normal(k1, (N, C, H, W), dtype=jnp.float32)
    target = jax.random.normal(k2, (N, C, H, W), dtype=jnp.float32)
    weight = jax.random.uniform(k3, (N, C, H, W), dtype=jnp.float32)

    # reduction='mean' (module default), no element-wise weight (specialized).
    out_mean = jax.block_until_ready(MSELossPallas()(pred, target))
    ref_mean = jnp.mean((pred - target) ** 2)
    assert jnp.allclose(out_mean, ref_mean, rtol=1e-5, atol=1e-5)

    # reduction='sum' with element-wise weight.
    out_sum = jax.block_until_ready(
        MSELossPallas(loss_weight=0.5, reduction="sum")(pred, target, weight))
    ref_sum = 0.5 * jnp.sum(((pred - target) ** 2) * weight)
    assert jnp.allclose(out_sum, ref_sum, rtol=1e-5, atol=1e-5)

    # reduction='none' with element-wise weight.
    out_none = jax.block_until_ready(
        MSELossPallas(loss_weight=2.0, reduction="none")(pred, target, weight))
    ref_none = 2.0 * ((pred - target) ** 2) * weight
    assert out_none.shape == (N, C, H, W)
    assert jnp.allclose(out_none, ref_none, rtol=1e-5, atol=1e-5)

    # Larger lane-dense shape: multi-block grid, no ragged tail.
    k4, k5 = jax.random.split(k3)
    p2 = jax.random.normal(k4, (2, 8, 64, 128), dtype=jnp.float32)
    t2 = jax.random.normal(k5, (2, 8, 64, 128), dtype=jnp.float32)
    out_m2 = jax.block_until_ready(mse_loss_pallas(p2, t2, reduction="mean"))
    assert jnp.allclose(out_m2, jnp.mean((p2 - t2) ** 2), rtol=1e-5, atol=1e-5)
    out_n2 = jax.block_until_ready(mse_loss_pallas(p2, t2, reduction="none"))
    assert jnp.allclose(out_n2, (p2 - t2) ** 2, rtol=1e-5, atol=1e-5)

    # Ragged tail: rows not a multiple of the row block -> pl.when-gated mask
    # in the reduce kernel, dropped OOB writes in the 'none' kernel.
    k6, k7 = jax.random.split(k5)
    p3 = jax.random.normal(k6, (3, 5, 40, 128), dtype=jnp.float32)
    t3 = jax.random.normal(k7, (3, 5, 40, 128), dtype=jnp.float32)
    out_s3 = jax.block_until_ready(mse_loss_pallas(p3, t3, reduction="sum"))
    assert jnp.allclose(out_s3, jnp.sum((p3 - t3) ** 2), rtol=1e-4, atol=1e-4)
    out_n3 = jax.block_until_ready(mse_loss_pallas(p3, t3, reduction="none"))
    assert jnp.allclose(out_n3, (p3 - t3) ** 2, rtol=1e-5, atol=1e-5)

    # Element count with no 128-multiple factor: full-lane-extent fallback.
    k8, k9 = jax.random.split(k7)
    p4 = jax.random.normal(k8, (2, 3, 5, 48), dtype=jnp.float32)
    t4 = jax.random.normal(k9, (2, 3, 5, 48), dtype=jnp.float32)
    out_m4 = jax.block_until_ready(mse_loss_pallas(p4, t4, reduction="mean"))
    assert jnp.allclose(out_m4, jnp.mean((p4 - t4) ** 2), rtol=1e-5, atol=1e-5)
    out_n4 = jax.block_until_ready(mse_loss_pallas(p4, t4, reduction="none"))
    assert jnp.allclose(out_n4, (p4 - t4) ** 2, rtol=1e-5, atol=1e-5)

    print("KERNEL_OK")
</pallas_src>

<mosaic_0001>
module attributes {stable_mosaic.version = 11 : i64} {
  func.func @_mse_partial_kernel(%arg0: i32, %arg1: memref<1x2048xf32, #tpu.memory_space<vmem>>, %arg2: memref<1x2048xf32, #tpu.memory_space<vmem>>, %arg3: memref<1x2048xf32, #tpu.memory_space<vmem>>) attributes {dimension_semantics = [#tpu.dimension_semantics<parallel>], iteration_bounds = array<i64: 1>, scalar_prefetch = 0 : i64, scratch_operands = 0 : i64, tpu.core_type = #tpu.core_type<tc>, window_params = [{transform_indices = @transform_0, window_bounds = array<i64: 1, 2048>}, {transform_indices = @transform_1, window_bounds = array<i64: 1, 2048>}, {transform_indices = @transform_2, window_bounds = array<i64: 1, 2048>}]} {
    %c0 = arith.constant 0 : index
    %c0_0 = arith.constant 0 : index
    %0 = vector.load %arg1[%c0, %c0_0] : memref<1x2048xf32, #tpu.memory_space<vmem>>, vector<1x2048xf32>
    %c0_1 = arith.constant 0 : index
    %c0_2 = arith.constant 0 : index
    %1 = vector.load %arg2[%c0_1, %c0_2] : memref<1x2048xf32, #tpu.memory_space<vmem>>, vector<1x2048xf32>
    %2 = arith.subf %0, %1 : vector<1x2048xf32>
    %3 = arith.mulf %2, %2 : vector<1x2048xf32>
    %cst = arith.constant dense<0.000000e+00> : vector<2048xf32>
    %4 = vector.multi_reduction <add>, %3, %cst [0] : vector<1x2048xf32> to vector<2048xf32>
    %5 = vector.shape_cast %4 : vector<2048xf32> to vector<1x2048xf32>
    %c0_3 = arith.constant 0 : index
    %c0_4 = arith.constant 0 : index
    %6 = vector.load %arg3[%c0_3, %c0_4] : memref<1x2048xf32, #tpu.memory_space<vmem>>, vector<1x2048xf32>
    tpu.vector_store %arg3[%c0_3, %c0_4], %5 {strides = array<i32>} : memref<1x2048xf32, #tpu.memory_space<vmem>>, vector<1x2048xf32>,
    return
  }
  func.func @transform_0(%arg0: i32) -> (i32, i32) {
    %c0_i32 = arith.constant 0 : i32
    %c0_i32_0 = arith.constant 0 : i32
    return %arg0, %c0_i32 : i32, i32
  }
  func.func @transform_1(%arg0: i32) -> (i32, i32) {
    %c0_i32 = arith.constant 0 : i32
    %c0_i32_0 = arith.constant 0 : i32
    return %arg0, %c0_i32 : i32, i32
  }
  func.func @transform_2(%arg0: i32) -> (i32, i32) {
    %c0_i32 = arith.constant 0 : i32
    %c0_i32_0 = arith.constant 0 : i32
    return %arg0, %c0_i32 : i32, i32
  }
}

</mosaic_0001>

<llo_original>
// kernel: tpu_custom_call.1
$region0: #{tpu_custom_call.1}
  #allocation0 [shape = 'u32[]', space=smem, size = 0x4, offset = 0x4, fixed_abs, tag = 'smem constant byte address 0x4 - core index']
  #allocation1 [shape = 'u32[144,128]{1,0:T(1,128)}', space=vmem, size = 0x12000, scoped, tag = 'internal scratch']
  %s0 = inlined_call_operand.hbm [shape: f32[1,2048], index: 0, kind: input, shape index: {}]
  %s1 = inlined_call_operand.hbm [shape: f32[1,2048], index: 1, kind: input, shape index: {}]
  %s2 = inlined_call_operand.hbm [shape: f32[1,2048], index: 2, kind: output, shape index: {}]
  %s3 = sld [smem:[#allocation0]]
  $region26: #{tpu_custom_call.1} parent=0
    _
  %s5 = ssub.s32 1, %s3
  %s6 = scalar_select 0, %s5, %s3
  $region1: #{tpu_custom_call.1} parent=0
    #allocation2 [shape = 'u8[8192]{0}', space=vmem, size = 0x2000, scoped, tag = 'input window, operand 0, single buffered']
    #allocation3 [shape = 's32[1]{0}', space=sflag, size = 0x4, scoped, tag = 'scoped memory for tpu_custom_call.1']
    #allocation4 [shape = 's32[1]{0}', space=sflag, size = 0x4, scoped, tag = 'scoped memory for tpu_custom_call.1']
    #allocation5 [shape = 'u8[8192]{0}', space=vmem, size = 0x2000, scoped, tag = 'input window, operand 1, single buffered']
    #allocation6 [shape = 's32[1]{0}', space=sflag, size = 0x4, scoped, tag = 'scoped memory for tpu_custom_call.1']
    #allocation7 [shape = 'u8[8192]{0}', space=vmem, size = 0x2000, scoped, tag = 'output window, operand 0, single buffered']
    %7 = vsyncpa [#allocation3], 0
    %8 = vsyncpa [#allocation6], 0
    %9 = vsyncpa [#allocation4], 0
    // Predicated region
    $region2: #{tpu_custom_call.1} parent=1 // pred_check
      _
    $region3: #{tpu_custom_call.1} parent=1 // pred_check_branch
      %11 = sbr.rel (0) target = $region5
    $region4: #{tpu_custom_call.1} parent=1 // pred_region
      %s13 = ssub.s32 256, 256
      %14 = vsyncadd [#allocation3], %s13
      %s16 = sshll.u32 [#allocation2], 4
      %s17 = int_to_ptr.vmem [resolvable:$true] %s16
      %19 = dma.hbm_to_vmem [thread:$0]  %s0, 256, %s17, [#allocation3]
    $region5: #{tpu_custom_call.1} parent=1 // pred_fallthru
      _
    // Predicated region
    $region6: #{tpu_custom_call.1} parent=1 // pred_check
      _
    $region7: #{tpu_custom_call.1} parent=1 // pred_check_branch
      %21 = sbr.rel (0) target = $region9
    $region8: #{tpu_custom_call.1} parent=1 // pred_region
      %s23 = ssub.s32 256, 256
      %24 = vsyncadd [#allocation6], %s23
      %s26 = sshll.u32 [#allocation5], 4
      %s27 = int_to_ptr.vmem [resolvable:$true] %s26
      %29 = dma.hbm_to_vmem [thread:$0]  %s1, 256, %s27, [#allocation6]
    $region9: #{tpu_custom_call.1} parent=1 // pred_fallthru
      _
    // Predicated region
    $region10: #{tpu_custom_call.1} parent=1 // pred_check
      _
    $region11: #{tpu_custom_call.1} parent=1 // pred_check_branch
      %31 = sbr.rel (0) target = $region13
    $region12: #{tpu_custom_call.1} parent=1 // pred_region
      %32 = dma.done [#allocation3], 256
    $region13: #{tpu_custom_call.1} parent=1 // pred_fallthru
      _
    // Predicated region
    $region14: #{tpu_custom_call.1} parent=1 // pred_check
      _
    $region15: #{tpu_custom_call.1} parent=1 // pred_check_branch
      %34 = sbr.rel (0) target = $region17
    $region16: #{tpu_custom_call.1} parent=1 // pred_region
      %35 = dma.done [#allocation6], 256
    $region17: #{tpu_custom_call.1} parent=1 // pred_fallthru
      _
    %v36 = vld [vmem:[#allocation2] sm:$0xff]
    %v37 = vld [vmem:[#allocation2 + $0x8] sm:$0xff]
    %v38 = vld [vmem:[#allocation5] sm:$0xff]
    %v39 = vld [vmem:[#allocation5 + $0x8] sm:$0xff]
    %v40 = vsub.f32 %v36, %v38
    %v41 = vsub.f32 %v37, %v39
    %v42 = vmul.f32 %v40, %v40
    %v43 = vmul.f32 %v41, %v41
    %v44 = vadd.f32 %v42, 0.0
    %v45 = vadd.f32 %v43, 0.0
    %46 = vst [vmem:[#allocation7] sm:$0xff] %v44
    %47 = vst [vmem:[#allocation7 + $0x8] sm:$0xff] %v45
    // Predicated region
    $region18: #{tpu_custom_call.1} parent=1 // pred_check
      _
    $region19: #{tpu_custom_call.1} parent=1 // pred_check_branch
      %49 = sbr.rel (0) target = $region21
    $region20: #{tpu_custom_call.1} parent=1 // pred_region
      %s51 = ssub.s32 256, 256
      %52 = vsyncadd [#allocation4], %s51
      %s54 = sshll.u32 [#allocation7], 4
      %s55 = int_to_ptr.vmem [resolvable:$true] %s54
      %57 = dma.vmem_to_hbm [thread:$0]  %s55, 256, %s2, [#allocation4]
    $region21: #{tpu_custom_call.1} parent=1 // pred_fallthru
      _
    // Predicated region
    $region22: #{tpu_custom_call.1} parent=1 // pred_check
      _
    $region23: #{tpu_custom_call.1} parent=1 // pred_check_branch
      %59 = sbr.rel (0) target = $region25
    $region24: #{tpu_custom_call.1} parent=1 // pred_region
      %60 = dma.done [#allocation4], 256
    $region25: #{tpu_custom_call.1} parent=1 // pred_fallthru
      _
    %61 = vsyncpa [#allocation3], 1
    %62 = vsyncpa [#allocation6], 1
    %63 = vsyncpa [#allocation4], 1

</llo_original>
